<compile_context>
chip_gen: v6e
topology: v6e:2x2x1
jax: 0.10.0
libtpu: 0.0.40
codegen_flags: <defaults>
</compile_context>

<pallas_src>
import jax
import jax.numpy as jnp
from jax.experimental import pallas as pl
from jax.experimental.pallas import tpu as pltpu


LANE = 128
_TARGET_BLOCK_BYTES = 8 * 1024 * 1024    # ~8 MiB blocks: amortizes the ~0.35 us
                                         # per-grid-step overhead even at v7x's
                                         # 3.2 TB/s per-TC HBM bandwidth.
_MIN_GRID_STEPS = 8                      # keep a multi-step grid on big tensors
                                         # (v7x megacore sharding + pipelining).
_VMEM_LIMIT_CAP = 48 * 1024 * 1024       # v7x has only 64 MiB VMEM per TC.
_SMALL_FALLBACK_BYTES = 4 * 1024 * 1024  # cutoff for single-full-block copies.


def _copy_kernel(x_ref, o_ref):
    # Pure tile copy through VMEM; no compute. Store slot / DMA engine bound.
    o_ref[...] = x_ref[...]


def _resolve_view_shape(total, shape):
    """Mimic torch.Tensor.view() shape resolution (single -1 allowed)."""
    shape = tuple(int(s) for s in shape)
    if shape.count(-1) > 1:
        raise ValueError("only one dimension can be inferred")
    if -1 in shape:
        known = 1
        for s in shape:
            if s != -1:
                known *= s
        if known == 0 or total % known != 0:
            raise ValueError(f"shape {shape} is invalid for input of size {total}")
        shape = tuple(total // known if s == -1 else s for s in shape)
    prod = 1
    for s in shape:
        prod *= s
    if prod != total:
        raise ValueError(f"shape {shape} is invalid for input of size {total}")
    return shape


def _sublane_multiple(dtype):
    """Dtype-aware sublane granularity: >=4B -> 8, 2B -> 16, 1B -> 32."""
    itemsize = jnp.dtype(dtype).itemsize
    if itemsize >= 4:
        return 8
    return 8 * (4 // max(itemsize, 1))


def _pick_width(total):
    """Widest lane-dense last dim (multiple of 128) that divides the flat size."""
    for w in (32768, 16384, 8192, 4096, 2048, 1024, 512, 256, 128):
        if total % w == 0:
            return w
    return None


def _refine_block_rows(rows, block_rows, sub):
    """Prefer a block height that divides `rows` exactly (no masked last block),
    searching downward (sub-aligned) but not below half the candidate."""
    if rows % block_rows == 0:
        return block_rows
    lo = max(sub, (block_rows // 2 // sub) * sub)
    cand = block_rows - sub
    while cand >= lo:
        if rows % cand == 0:
            return cand
        cand -= sub
    return block_rows


def _tiled_copy_2d(flat, rows, width, target_block_bytes):
    """Pallas lane-dense 2-D slab copy: flat (rows*width,) -> (rows, width)."""
    itemsize = jnp.dtype(flat.dtype).itemsize
    sub = _sublane_multiple(flat.dtype)
    bytes_per_row = width * itemsize

    # Rows per block: as large as the byte budget allows, sublane-aligned.
    budget_rows = max(sub, (target_block_bytes // bytes_per_row) // sub * sub)
    # Guarantee >= _MIN_GRID_STEPS grid steps on big tensors so the "parallel"
    # axis can shard across v7x's two TensorCores and the DMA pipeline overlaps.
    if rows >= _MIN_GRID_STEPS * sub:
        cap = max(sub, (rows // _MIN_GRID_STEPS) // sub * sub)
        budget_rows = min(budget_rows, cap)

    if budget_rows >= rows:
        block_rows = rows                               # small tensor: one block
    else:
        block_rows = _refine_block_rows(rows, budget_rows, sub)

    block_bytes = block_rows * bytes_per_row
    # Input + output, each double-buffered: ~4x the block, plus headroom.
    vmem_limit = int(min(_VMEM_LIMIT_CAP,
                         max(16 << 20, 4 * block_bytes + (4 << 20))))

    x2d = flat.reshape(rows, width)                     # metadata-only (contiguous)
    return pl.pallas_call(
        _copy_kernel,
        out_shape=jax.ShapeDtypeStruct((rows, width), flat.dtype),
        grid=(pl.cdiv(rows, block_rows),),              # ragged tail -> masked store
        in_specs=[pl.BlockSpec((block_rows, width), lambda i: (i, 0))],
        out_specs=pl.BlockSpec((block_rows, width), lambda i: (i, 0)),
        compiler_params=pltpu.CompilerParams(
            dimension_semantics=("parallel",),          # v7x: split across 2 TCs
            vmem_limit_bytes=vmem_limit,
        ),
        cost_estimate=pl.CostEstimate(
            flops=0, transcendentals=0,
            bytes_accessed=2 * rows * width * itemsize),
    )(x2d)


def _materializing_view(x, out_shape, target_block_bytes=_TARGET_BLOCK_BYTES):
    """Pallas copy producing a fresh buffer with the new shape."""
    total = x.size
    if total == 0:
        return x.reshape(out_shape)

    flat = x.reshape(-1)                                # metadata-only (contiguous)
    itemsize = jnp.dtype(x.dtype).itemsize
    width = _pick_width(total)
    if width is not None:
        out2d = _tiled_copy_2d(flat, total // width, width, target_block_bytes)
        return out2d.reshape(out_shape)                 # metadata-only (contiguous)

    # Flat size is not a multiple of 128: no clean lane-dense tiling exists,
    # but materialize=True must still produce a real (non-aliasing) copy.
    if total * itemsize <= _SMALL_FALLBACK_BYTES:
        out = pl.pallas_call(
            _copy_kernel,
            out_shape=jax.ShapeDtypeStruct((1, total), x.dtype),
            cost_estimate=pl.CostEstimate(
                flops=0, transcendentals=0,
                bytes_accessed=2 * total * itemsize),
        )(flat.reshape(1, total))
        return out.reshape(out_shape)

    # Rare: large AND not 128-divisible. Pad to a lane-dense slab, copy, slice.
    # (pad + slice cost one extra HBM pass each; only hit on this odd path.)
    pad = (-total) % (8 * LANE)
    padded = jnp.pad(flat, (0, pad))
    pw = _pick_width(total + pad)
    out2d = _tiled_copy_2d(padded, (total + pad) // pw, pw, target_block_bytes)
    return out2d.reshape(-1)[:total].reshape(out_shape)


def view_pallas(x, *shape, materialize=False):
    """Equivalent of torch `View(*shape)(x)`.

    Default (hot) path is a metadata-only reshape — identical to torch's
    .view() on a contiguous tensor and free of HBM traffic.  Set
    `materialize=True` to force the tuned Pallas copy kernel.
    """
    out_shape = _resolve_view_shape(x.size, shape)
    if not materialize:
        return x.reshape(out_shape)
    return _materializing_view(x, out_shape)


class ViewJax:
    """Mirror of the PyTorch View module."""

    def __init__(self, *shape):
        self.shape = shape

    def __call__(self, x, materialize=False):
        return view_pallas(x, *self.shape, materialize=materialize)


if __name__ == "__main__":
    k0, k1, k2, k3 = jax.random.split(jax.random.PRNGKey(0), 4)

    # NCHW feature map as used by the GAN code: View(-1, C*H*W).
    x = jax.random.normal(k0, (2, 4, 16, 16), dtype=jnp.float32)
    view = ViewJax(-1, 4 * 16 * 16)
    ref = x.reshape(-1, 4 * 16 * 16)

    # Hot path: metadata-only reshape (what torch .view actually does).
    y_fast = jax.block_until_ready(view(x))
    assert y_fast.shape == ref.shape and y_fast.dtype == ref.dtype
    assert bool(jnp.all(y_fast == ref))

    # Pallas copy kernel path, exercised once for validation.
    y_mat = jax.block_until_ready(view(x, materialize=True))
    assert y_mat.shape == ref.shape and y_mat.dtype == ref.dtype
    assert bool(jnp.all(y_mat == ref))

    # Different target rank through the kernel.
    y2 = jax.block_until_ready(ViewJax(2, 16, 64)(x, materialize=True))
    assert y2.shape == (2, 16, 64)
    assert bool(jnp.all(y2 == x.reshape(2, 16, 64)))

    # Multi-step grid with a ragged, masked last block: total=36864 ->
    # width 4096, rows 9; tiny block budget -> block_rows 8 -> grid=2.
    x3 = jax.random.normal(k1, (2, 4, 36, 128), dtype=jnp.float32)
    y3 = jax.block_until_ready(
        _materializing_view(x3, (2, 4 * 36 * 128), target_block_bytes=16 * 1024))
    assert bool(jnp.all(y3 == x3.reshape(2, 4 * 36 * 128)))

    # bf16: dtype-aware sublane multiple (16) path.
    xb = jax.random.normal(k2, (2, 4, 16, 16), dtype=jnp.bfloat16)
    yb = jax.block_until_ready(ViewJax(-1, 1024)(xb, materialize=True))
    assert bool(jnp.all(yb == xb.reshape(-1, 1024)))

    # Flat size not a multiple of 128: fallback still produces a real copy.
    x4 = jax.random.normal(k3, (3, 5, 7), dtype=jnp.float32)
    y4 = jax.block_until_ready(ViewJax(-1, 7)(x4, materialize=True))
    assert y4.shape == (15, 7)
    assert bool(jnp.all(y4 == x4.reshape(-1, 7)))

    print("KERNEL_OK")
</pallas_src>

<mosaic_0001>
module attributes {stable_mosaic.version = 11 : i64} {
  func.func @_copy_kernel(%arg0: i32, %arg1: memref<1x2048xf32, #tpu.memory_space<vmem>>, %arg2: memref<1x2048xf32, #tpu.memory_space<vmem>>) attributes {dimension_semantics = [#tpu.dimension_semantics<parallel>], iteration_bounds = array<i64: 1>, scalar_prefetch = 0 : i64, scratch_operands = 0 : i64, tpu.core_type = #tpu.core_type<tc>, window_params = [{transform_indices = @transform_0, window_bounds = array<i64: 1, 2048>}, {transform_indices = @transform_1, window_bounds = array<i64: 1, 2048>}]} {
    %c0 = arith.constant 0 : index
    %c0_0 = arith.constant 0 : index
    %0 = vector.load %arg1[%c0, %c0_0] : memref<1x2048xf32, #tpu.memory_space<vmem>>, vector<1x2048xf32>
    %c0_1 = arith.constant 0 : index
    %c0_2 = arith.constant 0 : index
    %1 = vector.load %arg2[%c0_1, %c0_2] : memref<1x2048xf32, #tpu.memory_space<vmem>>, vector<1x2048xf32>
    tpu.vector_store %arg2[%c0_1, %c0_2], %0 {strides = array<i32>} : memref<1x2048xf32, #tpu.memory_space<vmem>>, vector<1x2048xf32>,
    return
  }
  func.func @transform_0(%arg0: i32) -> (i32, i32) {
    %c0_i32 = arith.constant 0 : i32
    %c0_i32_0 = arith.constant 0 : i32
    return %arg0, %c0_i32 : i32, i32
  }
  func.func @transform_1(%arg0: i32) -> (i32, i32) {
    %c0_i32 = arith.constant 0 : i32
    %c0_i32_0 = arith.constant 0 : i32
    return %arg0, %c0_i32 : i32, i32
  }
}

</mosaic_0001>

<llo_original>
// kernel: tpu_custom_call.1
$region0: #{tpu_custom_call.1}
  #allocation0 [shape = 'u32[]', space=smem, size = 0x4, offset = 0x4, fixed_abs, tag = 'smem constant byte address 0x4 - core index']
  #allocation1 [shape = 'u32[144,128]{1,0:T(1,128)}', space=vmem, size = 0x12000, scoped, tag = 'internal scratch']
  %s0 = inlined_call_operand.hbm [shape: f32[1,2048], index: 0, kind: input, shape index: {}]
  %s1 = inlined_call_operand.hbm [shape: f32[1,2048], index: 1, kind: output, shape index: {}]
  %s2 = sld [smem:[#allocation0]]
  $region18: #{tpu_custom_call.1} parent=0
    _
  %s4 = ssub.s32 1, %s2
  %s5 = scalar_select 0, %s4, %s2
  $region1: #{tpu_custom_call.1} parent=0
    #allocation2 [shape = 'u8[8192]{0}', space=vmem, size = 0x2000, scoped, tag = 'input window, operand 0, single buffered']
    #allocation3 [shape = 's32[1]{0}', space=sflag, size = 0x4, scoped, tag = 'scoped memory for tpu_custom_call.1']
    #allocation4 [shape = 's32[1]{0}', space=sflag, size = 0x4, scoped, tag = 'scoped memory for tpu_custom_call.1']
    #allocation5 [shape = 'u8[8192]{0}', space=vmem, size = 0x2000, scoped, tag = 'output window, operand 0, single buffered']
    %6 = vsyncpa [#allocation3], 0
    %7 = vsyncpa [#allocation4], 0
    // Predicated region
    $region2: #{tpu_custom_call.1} parent=1 // pred_check
      _
    $region3: #{tpu_custom_call.1} parent=1 // pred_check_branch
      %9 = sbr.rel (0) target = $region5
    $region4: #{tpu_custom_call.1} parent=1 // pred_region
      %s11 = ssub.s32 256, 256
      %12 = vsyncadd [#allocation3], %s11
      %s14 = sshll.u32 [#allocation2], 4
      %s15 = int_to_ptr.vmem [resolvable:$true] %s14
      %17 = dma.hbm_to_vmem [thread:$0]  %s0, 256, %s15, [#allocation3]
    $region5: #{tpu_custom_call.1} parent=1 // pred_fallthru
      _
    // Predicated region
    $region6: #{tpu_custom_call.1} parent=1 // pred_check
      _
    $region7: #{tpu_custom_call.1} parent=1 // pred_check_branch
      %19 = sbr.rel (0) target = $region9
    $region8: #{tpu_custom_call.1} parent=1 // pred_region
      %20 = dma.done [#allocation3], 256
    $region9: #{tpu_custom_call.1} parent=1 // pred_fallthru
      _
    %v21 = vld [vmem:[#allocation2] sm:$0xff]
    %v22 = vld [vmem:[#allocation2 + $0x8] sm:$0xff]
    %23 = vst [vmem:[#allocation5] sm:$0xff] %v21
    %24 = vst [vmem:[#allocation5 + $0x8] sm:$0xff] %v22
    // Predicated region
    $region10: #{tpu_custom_call.1} parent=1 // pred_check
      _
    $region11: #{tpu_custom_call.1} parent=1 // pred_check_branch
      %26 = sbr.rel (0) target = $region13
    $region12: #{tpu_custom_call.1} parent=1 // pred_region
      %s28 = ssub.s32 256, 256
      %29 = vsyncadd [#allocation4], %s28
      %s31 = sshll.u32 [#allocation5], 4
      %s32 = int_to_ptr.vmem [resolvable:$true] %s31
      %34 = dma.vmem_to_hbm [thread:$0]  %s32, 256, %s1, [#allocation4]
    $region13: #{tpu_custom_call.1} parent=1 // pred_fallthru
      _
    // Predicated region
    $region14: #{tpu_custom_call.1} parent=1 // pred_check
      _
    $region15: #{tpu_custom_call.1} parent=1 // pred_check_branch
      %36 = sbr.rel (0) target = $region17
    $region16: #{tpu_custom_call.1} parent=1 // pred_region
      %37 = dma.done [#allocation4], 256
    $region17: #{tpu_custom_call.1} parent=1 // pred_fallthru
      _
    %38 = vsyncpa [#allocation3], 1
    %39 = vsyncpa [#allocation4], 1

</llo_original>
